<compile_context>
chip_gen: v5e
topology: v5e:2x2
jax: 0.10.0
libtpu: 0.0.40
codegen_flags: <defaults>
</compile_context>

<pallas_src>
import jax
import jax.numpy as jnp
from jax.experimental import pallas as pl
from jax.experimental.pallas import tpu as pltpu

_NEG_BIG = -1e30
_VMEM_LIMIT = 32 * 1024 * 1024


def _round_up(x, m):
    return ((x + m - 1) // m) * m


def _pick_s_tile(S):
    # single tile for short sources; 256-wide (8- and 128-aligned) tiles otherwise
    return _round_up(S, 8) if S <= 256 else 256


def _pick_row_tile(rows):
    for t in (1024, 512, 256, 128):
        if rows % t == 0:
            return t
    return rows


def _pick_vocab_tile(v_pad):
    # biggest tile (amortize grid-step overhead) while keeping >=2 tiles so the
    # parallel grid actually splits across v7x's two TensorCores.
    for tv in (2048, 1024, 512, 256, 128):
        if v_pad % tv == 0 and v_pad // tv >= 2:
            return tv
    return v_pad


def _const_spec(shape):
    nd = len(shape)
    return pl.BlockSpec(shape, lambda *_: (0,) * nd)


# ----------------------------------------------------------------------------
# Kernel 1 (once per source sequence): attention keys ctx@W_c^T + b  (+ bf16 ctx)
# ----------------------------------------------------------------------------
def _ctx_proj_kernel(ctx_ref, wc_ref, b_ref, ctxp_ref, ctxb_ref):
    x = ctx_ref[...]
    proj = jnp.dot(x.astype(wc_ref.dtype), wc_ref[...],
                   preferred_element_type=jnp.float32) + b_ref[...]
    ctxp_ref[...] = proj.astype(ctxp_ref.dtype)
    ctxb_ref[...] = x.astype(ctxb_ref.dtype)


def prepare_sequence(ctx, mask, packed):
    """Once per source sequence: pad batch/S, precompute the step-invariant
    attention keys and a padded bf16 copy of ctx, and build the additive mask.
    The returned dict is reused by every decode step of this sequence."""
    B, S, Hd = ctx.shape
    b_pad = _round_up(B, 8)
    tS = _pick_s_tile(S)
    S_pad = _round_up(S, tS)

    ctx_p = jnp.zeros((b_pad, S_pad, Hd), jnp.float32).at[:B, :S].set(
        ctx.astype(jnp.float32))
    rows = b_pad * S_pad
    flat = ctx_p.reshape(rows, Hd)
    tR = _pick_row_tile(rows)
    cdt = packed["wc_t"].dtype

    ctx_proj, ctx_bf = pl.pallas_call(
        _ctx_proj_kernel,
        out_shape=(jax.ShapeDtypeStruct((rows, Hd), cdt),
                   jax.ShapeDtypeStruct((rows, Hd), cdt)),
        grid=(rows // tR,),
        in_specs=[pl.BlockSpec((tR, Hd), lambda i: (i, 0)),
                  pl.BlockSpec((Hd, Hd), lambda i: (0, 0)),
                  pl.BlockSpec((1, Hd), lambda i: (0, 0))],
        out_specs=(pl.BlockSpec((tR, Hd), lambda i: (i, 0)),
                   pl.BlockSpec((tR, Hd), lambda i: (i, 0))),
        compiler_params=pltpu.CompilerParams(
            dimension_semantics=("parallel",),
            vmem_limit_bytes=_VMEM_LIMIT),
    )(flat, packed["wc_t"], packed["wa_b"])

    mask_p = jnp.zeros((b_pad, S_pad), jnp.float32).at[:B, :S].set(
        mask.astype(jnp.float32))
    mask_add = (mask_p - 1.0) * 1e10     # 0 keep / -1e10 masked (incl. padding)

    return {"ctx_bf16": ctx_bf.reshape(b_pad, S_pad, Hd),
            "ctx_proj": ctx_proj.reshape(b_pad, S_pad, Hd),
            "mask_add": mask_add,
            "b_pad": b_pad, "S_pad": S_pad, "tS": tS}


# ----------------------------------------------------------------------------
# Kernel 2: flash-style attention over S tiles + stacked GRU (one decode step)
# ----------------------------------------------------------------------------
def _make_step_kernel(n_layers, H, Hd):
    n_gru = 5 + 4 * (n_layers - 1)

    def kernel(*refs):
        (e_ref, ctx_ref, ctxp_ref, s_ref, mask_ref, wq_ref, va_ref) = refs[:7]
        gru_refs = refs[7:7 + n_gru]
        (s_new_ref, h_top_ref, m_sc, l_sc, c_sc, qp_sc) = refs[7 + n_gru:]

        k = pl.program_id(0)
        last = pl.num_programs(0) - 1

        @pl.when(k == 0)
        def _init():
            m_sc[...] = jnp.full(m_sc.shape, _NEG_BIG, jnp.float32)
            l_sc[...] = jnp.zeros(l_sc.shape, jnp.float32)
            c_sc[...] = jnp.zeros(c_sc.shape, jnp.float32)
            q = s_ref[n_layers - 1]                                   # [Bp, H]
            # q-repeat over directions folded into wq_eff
            qp_sc[...] = jnp.dot(q.astype(wq_ref.dtype), wq_ref[...],
                                 preferred_element_type=jnp.float32)  # [Bp, Hd]

        # ---- Bahdanau scores on this S tile (flash-style running softmax) ----
        ctxp = ctxp_ref[...].astype(jnp.float32)                      # [Bp,tS,Hd]
        h_att = jnp.tanh(qp_sc[...][:, None, :] + ctxp)
        va = va_ref[...].reshape(1, 1, Hd)
        # VPU multiply + XLU lane-reduce instead of an N=1 MXU matmul
        scores = jnp.sum(h_att * va, axis=-1) + mask_ref[...]         # [Bp, tS]

        m_prev = m_sc[...]
        m_new = jnp.maximum(m_prev, jnp.max(scores, axis=-1, keepdims=True))
        alpha = jnp.exp(m_prev - m_new)
        p = jnp.exp(scores - m_new)                                   # [Bp, tS]
        l_sc[...] = alpha * l_sc[...] + jnp.sum(p, axis=-1, keepdims=True)
        ctx_v = ctx_ref[...].astype(jnp.float32)                      # [Bp,tS,Hd]
        c_sc[...] = alpha * c_sc[...] + jnp.sum(p[:, :, None] * ctx_v, axis=1)
        m_sc[...] = m_new

        # ---- after the last S tile: context, stacked GRU, outputs ----
        @pl.when(k == last)
        def _finalize():
            c = c_sc[...] * pl.reciprocal(l_sc[...], approx=True)     # [Bp, Hd]
            e = e_ref[...]                                            # [Bp, E]
            x = e
            for l in range(n_layers):
                h = s_ref[l]                                          # [Bp, H]
                if l == 0:
                    we, wc, wh, bi, bh = gru_refs[0:5]
                    # split layer-0 input matmul: no in-kernel lane concat
                    gx = (jnp.dot(e.astype(we.dtype), we[...],
                                  preferred_element_type=jnp.float32)
                          + jnp.dot(c.astype(wc.dtype), wc[...],
                                    preferred_element_type=jnp.float32)
                          + bi[...])
                else:
                    base = 5 + 4 * (l - 1)
                    wx, wh, bi, bh = gru_refs[base:base + 4]
                    gx = jnp.dot(x.astype(wx.dtype), wx[...],
                                 preferred_element_type=jnp.float32) + bi[...]
                gh = jnp.dot(h.astype(wh.dtype), wh[...],
                             preferred_element_type=jnp.float32) + bh[...]
                # PyTorch GRU gate order (r, z, n)
                r = jax.nn.sigmoid(gx[:, 0:H] + gh[:, 0:H])
                z = jax.nn.sigmoid(gx[:, H:2 * H] + gh[:, H:2 * H])
                n = jnp.tanh(gx[:, 2 * H:3 * H] + r * gh[:, 2 * H:3 * H])
                h_new = (1.0 - z) * n + z * h
                s_new_ref[l] = h_new
                x = h_new          # inter-layer dropout is identity in eval mode
            h_top_ref[...] = x.astype(h_top_ref.dtype)

    return kernel


# ----------------------------------------------------------------------------
# Kernel 3: output projection, grid over vocab tiles (parallel on v7x megacore)
# ----------------------------------------------------------------------------
def _proj_kernel(h_ref, w_ref, b_ref, o_ref):
    o_ref[...] = (jnp.dot(h_ref[...].astype(w_ref.dtype), w_ref[...],
                          preferred_element_type=jnp.float32) + b_ref[...])


# ----------------------------------------------------------------------------
# One-time parameter packing (transpose / split / pad / bf16-cast outside kernel)
# ----------------------------------------------------------------------------
def prepare_params(params, *, n_embed, n_hiddens, n_layers, n_dir, n_vocab,
                   compute_dtype=jnp.bfloat16):
    H = n_hiddens
    Hd = H * n_dir
    cd = compute_dtype
    packed = {"emb": params["emb"]}   # embedding only used for JAX-side gather

    # Attention: split w_a into query/key halves, pre-transpose, fold the
    # torch `repeat(1, S, n_dir)` (contiguous blocks on the last dim) into the
    # query weight.
    wa = params["w_a_w"]                                   # [Hd, 2Hd]
    wq_t = wa[:, :Hd].T                                    # [Hd, Hd]
    wc_t = wa[:, Hd:].T                                    # [Hd, Hd]
    packed["wq_eff"] = wq_t.reshape(n_dir, H, Hd).sum(axis=0).astype(cd)  # [H, Hd]
    packed["wc_t"] = wc_t.astype(cd)
    packed["wa_b"] = params["w_a_b"].reshape(1, Hd).astype(jnp.float32)
    packed["va_w"] = params["v_a_w"].reshape(1, Hd).astype(jnp.float32)

    # GRU: two matmuls per layer (no zero-block fusion). Layer-0 input weight
    # split into embedding / context halves so the kernel needs no lane concat.
    w_ih0 = params["w_ih_0"]                               # [3H, E + Hd]
    packed["gru_we_0"] = w_ih0[:, :n_embed].T.astype(cd)   # [E, 3H]
    packed["gru_wc_0"] = w_ih0[:, n_embed:].T.astype(cd)   # [Hd, 3H]
    packed["gru_wh_0"] = params["w_hh_0"].T.astype(cd)     # [H, 3H]
    packed["gru_bi_0"] = params["b_ih_0"].reshape(1, 3 * H).astype(jnp.float32)
    packed["gru_bh_0"] = params["b_hh_0"].reshape(1, 3 * H).astype(jnp.float32)
    for l in range(1, n_layers):
        packed[f"gru_wx_{l}"] = params[f"w_ih_{l}"].T.astype(cd)   # [H, 3H]
        packed[f"gru_wh_{l}"] = params[f"w_hh_{l}"].T.astype(cd)   # [H, 3H]
        packed[f"gru_bi_{l}"] = params[f"b_ih_{l}"].reshape(1, 3 * H).astype(jnp.float32)
        packed[f"gru_bh_{l}"] = params[f"b_hh_{l}"].reshape(1, 3 * H).astype(jnp.float32)

    # Output projection: pad vocab to a lane multiple, store transposed [H, V_pad].
    v_pad = _round_up(n_vocab, 128)
    out_w_p = jnp.zeros((v_pad, H), jnp.float32).at[:n_vocab].set(params["out_w"])
    packed["out_w_t"] = out_w_p.T.astype(cd)               # [H, V_pad]
    packed["out_b"] = jnp.zeros((1, v_pad), jnp.float32).at[0, :n_vocab].set(params["out_b"])
    return packed


# ----------------------------------------------------------------------------
# Decode-step wrapper
# ----------------------------------------------------------------------------
def bahdanau_decoder_forward(y, state, mask, packed, *, n_vocab, n_layers,
                             seq_cache=None):
    ctx, s = state                      # ctx: [B, S, Hd], s: [L, B, H]
    B, S, Hd = ctx.shape
    L, _, H = s.shape
    assert L == n_layers

    if seq_cache is None:               # build per-sequence cache on demand
        seq_cache = prepare_sequence(ctx, mask, packed)
    b_pad = seq_cache["b_pad"]
    S_pad = seq_cache["S_pad"]
    tS = seq_cache["tS"]

    # Embedding lookup (gather) + dropout(identity, eval) in plain JAX glue.
    e = packed["emb"][y[:, 0]].astype(jnp.float32)          # [B, E]
    E = e.shape[1]
    e_p = jnp.zeros((b_pad, E), jnp.float32).at[:B].set(e)
    s_p = jnp.zeros((L, b_pad, H), jnp.float32).at[:, :B].set(s.astype(jnp.float32))

    inputs = [e_p, seq_cache["ctx_bf16"], seq_cache["ctx_proj"], s_p,
              seq_cache["mask_add"], packed["wq_eff"], packed["va_w"],
              packed["gru_we_0"], packed["gru_wc_0"], packed["gru_wh_0"],
              packed["gru_bi_0"], packed["gru_bh_0"]]
    in_specs = [
        _const_spec((b_pad, E)),
        pl.BlockSpec((b_pad, tS, Hd), lambda k: (0, k, 0)),
        pl.BlockSpec((b_pad, tS, Hd), lambda k: (0, k, 0)),
        _const_spec((L, b_pad, H)),
        pl.BlockSpec((b_pad, tS), lambda k: (0, k)),
        _const_spec((H, Hd)),
        _const_spec((1, Hd)),
        _const_spec((E, 3 * H)),
        _const_spec((Hd, 3 * H)),
        _const_spec((H, 3 * H)),
        _const_spec((1, 3 * H)),
        _const_spec((1, 3 * H)),
    ]
    for l in range(1, n_layers):
        inputs += [packed[f"gru_wx_{l}"], packed[f"gru_wh_{l}"],
                   packed[f"gru_bi_{l}"], packed[f"gru_bh_{l}"]]
        in_specs += [_const_spec((H, 3 * H)), _const_spec((H, 3 * H)),
                     _const_spec((1, 3 * H)), _const_spec((1, 3 * H))]

    s_new_p, h_top = pl.pallas_call(
        _make_step_kernel(n_layers, H, Hd),
        out_shape=(jax.ShapeDtypeStruct((L, b_pad, H), jnp.float32),
                   jax.ShapeDtypeStruct((b_pad, H), jnp.float32)),
        grid=(S_pad // tS,),
        in_specs=in_specs,
        out_specs=(_const_spec((L, b_pad, H)), _const_spec((b_pad, H))),
        scratch_shapes=[pltpu.VMEM((b_pad, 1), jnp.float32),   # running max
                        pltpu.VMEM((b_pad, 1), jnp.float32),   # running sum
                        pltpu.VMEM((b_pad, Hd), jnp.float32),  # ctx accumulator
                        pltpu.VMEM((b_pad, Hd), jnp.float32)], # q projection
        compiler_params=pltpu.CompilerParams(
            dimension_semantics=("arbitrary",),
            vmem_limit_bytes=_VMEM_LIMIT),
    )(*inputs)

    # Output projection, tiled over the (padded) vocab: weight tiles stream via
    # BlockSpec double-buffering and shard across both TCs on v7x.
    v_pad = packed["out_w_t"].shape[1]
    tv = _pick_vocab_tile(v_pad)
    o_p = pl.pallas_call(
        _proj_kernel,
        out_shape=jax.ShapeDtypeStruct((b_pad, v_pad), jnp.float32),
        grid=(v_pad // tv,),
        in_specs=[pl.BlockSpec((b_pad, H), lambda j: (0, 0)),
                  pl.BlockSpec((H, tv), lambda j: (0, j)),
                  pl.BlockSpec((1, tv), lambda j: (0, j))],
        out_specs=pl.BlockSpec((b_pad, tv), lambda j: (0, j)),
        compiler_params=pltpu.CompilerParams(
            dimension_semantics=("parallel",),
            vmem_limit_bytes=_VMEM_LIMIT),
    )(h_top, packed["out_w_t"], packed["out_b"])

    o = o_p[:B, :n_vocab]
    s_new = s_new_p[:, :B]
    # Match PyTorch shapes: o -> [B, 1, n_vocab]; state = (ctx, s_new)
    return o[:, None, :], (ctx, s_new)


# ----------------------------------------------------------------------------
# Deterministic parameter init (shapes follow the nn.Module __init__)
# ----------------------------------------------------------------------------
def init_params(key, *, n_vocab, n_embed, n_hiddens, n_layers, n_dir):
    Hd = n_hiddens * n_dir
    H = n_hiddens

    def nxt():
        nonlocal key
        key, sub = jax.random.split(key)
        return sub

    p = {}
    p["emb"] = 0.1 * jax.random.normal(nxt(), (n_vocab, n_embed), jnp.float32)
    # BahdanauAttention(Hd): w_a: Linear(2*Hd -> Hd), v_a: Linear(Hd -> 1, no bias)
    p["w_a_w"] = 0.1 * jax.random.normal(nxt(), (Hd, 2 * Hd), jnp.float32)
    p["w_a_b"] = 0.1 * jax.random.normal(nxt(), (Hd,), jnp.float32)
    p["v_a_w"] = 0.1 * jax.random.normal(nxt(), (1, Hd), jnp.float32)
    # GRU(n_embed + Hd -> H, num_layers); gate order (r, z, n)
    for l in range(n_layers):
        in_l = (n_embed + Hd) if l == 0 else H
        p[f"w_ih_{l}"] = 0.1 * jax.random.normal(nxt(), (3 * H, in_l), jnp.float32)
        p[f"w_hh_{l}"] = 0.1 * jax.random.normal(nxt(), (3 * H, H), jnp.float32)
        p[f"b_ih_{l}"] = 0.1 * jax.random.normal(nxt(), (3 * H,), jnp.float32)
        p[f"b_hh_{l}"] = 0.1 * jax.random.normal(nxt(), (3 * H,), jnp.float32)
    # out: Linear(H -> n_vocab)
    p["out_w"] = 0.1 * jax.random.normal(nxt(), (n_vocab, H), jnp.float32)
    p["out_b"] = 0.1 * jax.random.normal(nxt(), (n_vocab,), jnp.float32)
    return p


if __name__ == "__main__":
    # Small config consistent with the module
    n_vocab, n_embed, n_hiddens, n_layers = 32, 16, 32, 2
    use_birnn = False
    n_dir = 2 if use_birnn else 1
    B, S = 2, 8

    key = jax.random.PRNGKey(0)
    params = init_params(key, n_vocab=n_vocab, n_embed=n_embed,
                         n_hiddens=n_hiddens, n_layers=n_layers, n_dir=n_dir)
    packed = prepare_params(params, n_embed=n_embed, n_hiddens=n_hiddens,
                            n_layers=n_layers, n_dir=n_dir, n_vocab=n_vocab,
                            compute_dtype=jnp.bfloat16)

    k1, k2, k3 = jax.random.split(jax.random.PRNGKey(0), 3)
    y = jax.random.randint(k1, (B, 1), 0, n_vocab, dtype=jnp.int32)        # target tokens
    ctx = jax.random.normal(k2, (B, S, n_hiddens * n_dir), jnp.float32)    # encoder outputs
    s0 = jax.random.normal(k3, (n_layers, B, n_hiddens), jnp.float32)      # GRU hidden state
    mask = jnp.ones((B, S), jnp.float32).at[1, 5:].set(0.0)                # 1=keep, 0=masked

    # Per-sequence cache: padded bf16 ctx + precomputed attention keys +
    # additive mask, computed ONCE and reused for every decode step.
    cache = prepare_sequence(ctx, mask, packed)

    state = (ctx, s0)
    o1, state = bahdanau_decoder_forward(y, state, mask, packed,
                                         n_vocab=n_vocab, n_layers=n_layers,
                                         seq_cache=cache)
    y2 = jnp.argmax(o1[:, 0, :], axis=-1)[:, None].astype(jnp.int32)
    o2, state = bahdanau_decoder_forward(y2, state, mask, packed,
                                         n_vocab=n_vocab, n_layers=n_layers,
                                         seq_cache=cache)

    ctx_out, s_new = state
    jax.block_until_ready((o1, o2, ctx_out, s_new))
    assert o1.shape == (B, 1, n_vocab) and o2.shape == (B, 1, n_vocab)
    assert s_new.shape == (n_layers, B, n_hiddens)
    assert bool(jnp.all(jnp.isfinite(o1))) and bool(jnp.all(jnp.isfinite(o2)))
    assert bool(jnp.all(jnp.isfinite(s_new)))
    print("KERNEL_OK")
</pallas_src>

<mosaic_0001>
module attributes {stable_mosaic.version = 11 : i64} {
  func.func @_ctx_proj_kernel(%arg0: i32, %arg1: memref<64x32xf32, #tpu.memory_space<vmem>>, %arg2: memref<32x32xbf16, #tpu.memory_space<vmem>>, %arg3: memref<1x32xf32, #tpu.memory_space<vmem>>, %arg4: memref<64x32xbf16, #tpu.memory_space<vmem>>, %arg5: memref<64x32xbf16, #tpu.memory_space<vmem>>) attributes {dimension_semantics = [#tpu.dimension_semantics<parallel>], iteration_bounds = array<i64: 1>, scalar_prefetch = 0 : i64, scratch_operands = 0 : i64, tpu.core_type = #tpu.core_type<tc>, window_params = [{transform_indices = @transform_0, window_bounds = array<i64: 64, 32>}, {pipeline_mode = #tpu.pipeline_mode<synchronous>, transform_indices = @transform_1, window_bounds = array<i64: 32, 32>}, {pipeline_mode = #tpu.pipeline_mode<synchronous>, transform_indices = @transform_2, window_bounds = array<i64: 1, 32>}, {transform_indices = @transform_3, window_bounds = array<i64: 64, 32>}, {transform_indices = @transform_4, window_bounds = array<i64: 64, 32>}]} {
    %c0 = arith.constant 0 : index
    %c0_0 = arith.constant 0 : index
    %0 = vector.load %arg1[%c0, %c0_0] : memref<64x32xf32, #tpu.memory_space<vmem>>, vector<64x32xf32>
    %1 = arith.truncf %0 : vector<64x32xf32> to vector<64x32xbf16>
    %c0_1 = arith.constant 0 : index
    %c0_2 = arith.constant 0 : index
    %2 = vector.load %arg2[%c0_1, %c0_2] : memref<32x32xbf16, #tpu.memory_space<vmem>>, vector<32x32xbf16>
    %cst = arith.constant dense<0.000000e+00> : vector<64x32xf32>
    %3 = tpu.matmul %1, %2, %cst {dimension_numbers = #tpu.dot_dimension_numbers<[1], [0], [0], [1], [0, 0, 1, 1], [], []>} : vector<64x32xbf16>, vector<32x32xbf16>, vector<64x32xf32> -> vector<64x32xf32>
    %c0_3 = arith.constant 0 : index
    %c0_4 = arith.constant 0 : index
    %4 = vector.load %arg3[%c0_3, %c0_4] : memref<1x32xf32, #tpu.memory_space<vmem>>, vector<1x32xf32>
    %5 = vector.broadcast %4 : vector<1x32xf32> to vector<64x32xf32>
    %6 = arith.addf %3, %5 : vector<64x32xf32>
    %7 = arith.truncf %6 : vector<64x32xf32> to vector<64x32xbf16>
    %c0_5 = arith.constant 0 : index
    %c0_6 = arith.constant 0 : index
    %8 = vector.load %arg4[%c0_5, %c0_6] : memref<64x32xbf16, #tpu.memory_space<vmem>>, vector<64x32xbf16>
    tpu.vector_store %arg4[%c0_5, %c0_6], %7 {strides = array<i32>} : memref<64x32xbf16, #tpu.memory_space<vmem>>, vector<64x32xbf16>,
    %9 = arith.truncf %0 : vector<64x32xf32> to vector<64x32xbf16>
    %c0_7 = arith.constant 0 : index
    %c0_8 = arith.constant 0 : index
    %10 = vector.load %arg5[%c0_7, %c0_8] : memref<64x32xbf16, #tpu.memory_space<vmem>>, vector<64x32xbf16>
    tpu.vector_store %arg5[%c0_7, %c0_8], %9 {strides = array<i32>} : memref<64x32xbf16, #tpu.memory_space<vmem>>, vector<64x32xbf16>,
    return
  }
  func.func @transform_0(%arg0: i32) -> (i32, i32) {
    %c0_i32 = arith.constant 0 : i32
    %c0_i32_0 = arith.constant 0 : i32
    return %arg0, %c0_i32 : i32, i32
  }
  func.func @transform_1(%arg0: i32) -> (i32, i32) {
    %c0_i32 = arith.constant 0 : i32
    %c0_i32_0 = arith.constant 0 : i32
    %c0_i32_1 = arith.constant 0 : i32
    return %c0_i32, %c0_i32_0 : i32, i32
  }
  func.func @transform_2(%arg0: i32) -> (i32, i32) {
    %c0_i32 = arith.constant 0 : i32
    %c0_i32_0 = arith.constant 0 : i32
    %c0_i32_1 = arith.constant 0 : i32
    return %c0_i32, %c0_i32_0 : i32, i32
  }
  func.func @transform_3(%arg0: i32) -> (i32, i32) {
    %c0_i32 = arith.constant 0 : i32
    %c0_i32_0 = arith.constant 0 : i32
    return %arg0, %c0_i32 : i32, i32
  }
  func.func @transform_4(%arg0: i32) -> (i32, i32) {
    %c0_i32 = arith.constant 0 : i32
    %c0_i32_0 = arith.constant 0 : i32
    return %arg0, %c0_i32 : i32, i32
  }
}

</mosaic_0001>

<llo_original>
// kernel: tpu_custom_call.1
$region0: #{tpu_custom_call.1}
  #allocation0 [shape = 'u32[]', space=smem, size = 0x4, offset = 0x4, fixed_abs, tag = 'smem constant byte address 0x4 - core index']
  #allocation1 [shape = 'u32[72,128]{1,0:T(1,128)}', space=vmem, size = 0x9000, scoped, tag = 'internal scratch']
  %s0 = inlined_call_operand.vmem [shape: f32[64,32], index: 0, kind: input, shape index: {}]
  %s1 = inlined_call_operand.vmem [shape: bf16[32,32], index: 1, kind: input, shape index: {}]
  %s2 = inlined_call_operand.vmem [shape: f32[1,32], index: 2, kind: input, shape index: {}]
  %s3 = inlined_call_operand.vmem [shape: bf16[64,32], index: 3, kind: output, shape index: {0}]
  %s4 = inlined_call_operand.vmem [shape: bf16[64,32], index: 4, kind: output, shape index: {1}]
  %5 = xla_tuple %s3, %s4
  %s6 = sld [smem:[#allocation0]]
  $region30: #{tpu_custom_call.1} parent=0
    _
  %s8 = ssub.s32 1, %s6
  %s9 = scalar_select 0, %s8, %s6
  // Predicated region
  $region2: #{tpu_custom_call.1} parent=0 // pred_check
    _
  $region3: #{tpu_custom_call.1} parent=0 // pred_check_branch
    %11 = sbr.rel (0) target = $region5
  $region4: #{tpu_custom_call.1} parent=0 // pred_region
    _
  $region5: #{tpu_custom_call.1} parent=0 // pred_fallthru
    _
  // Predicated region
  $region6: #{tpu_custom_call.1} parent=0 // pred_check
    _
  $region7: #{tpu_custom_call.1} parent=0 // pred_check_branch
    %13 = sbr.rel (0) target = $region9
  $region8: #{tpu_custom_call.1} parent=0 // pred_region
    _
  $region9: #{tpu_custom_call.1} parent=0 // pred_fallthru
    _
  // Predicated region
  $region10: #{tpu_custom_call.1} parent=0 // pred_check
    _
  $region11: #{tpu_custom_call.1} parent=0 // pred_check_branch
    %15 = sbr.rel (0) target = $region13
  $region12: #{tpu_custom_call.1} parent=0 // pred_region
    _
  $region13: #{tpu_custom_call.1} parent=0 // pred_fallthru
    _
  %v17 = vld [vmem:[%s0] sm:$0xff]
  %v18 = vld [vmem:[%s0 + $0x8] sm:$0xff]
  %v19 = vld [vmem:[%s0 + $0x10] sm:$0xff]
  %v20 = vld [vmem:[%s0 + $0x18] sm:$0xff]
  %v21 = vld [vmem:[%s0 + $0x20] sm:$0xff]
  %v22 = vld [vmem:[%s0 + $0x28] sm:$0xff]
  %v23 = vld [vmem:[%s0 + $0x30] sm:$0xff]
  %v24 = vld [vmem:[%s0 + $0x38] sm:$0xff]
  %v25 = vpack.c.bf16 %v17, %v17
  %v26 = vpack.c.bf16 %v18, %v18
  %v27 = vpack.c.bf16 %v19, %v19
  %v28 = vpack.c.bf16 %v20, %v20
  %v29 = vpack.c.bf16 %v21, %v21
  %v30 = vpack.c.bf16 %v22, %v22
  %v31 = vpack.c.bf16 %v23, %v23
  %v32 = vpack.c.bf16 %v24, %v24
  %v33 = vld [vmem:[%s1] sm:$0xf]
  %v34 = vld [vmem:[%s1 + $0x4] sm:$0xf]
  %v35 = vld [vmem:[%s1 + $0x8] sm:$0xf]
  %v36 = vld [vmem:[%s1 + $0xc] sm:$0xf]
  %v37 = vld [vmem:[%s2] sm:$0x1]
  %v39 = vperm.slane %v37, 0
  %v49 = vunpack.c.l.b16 %v25
  %v50 = vunpack.c.l.b16 %v26
  %v51 = vunpack.c.l.b16 %v27
  %v52 = vunpack.c.l.b16 %v28
  %v53 = vunpack.c.l.b16 %v29
  %v54 = vunpack.c.l.b16 %v30
  %v55 = vunpack.c.l.b16 %v31
  %v56 = vunpack.c.l.b16 %v32
  %v57 = vpack.c.b16 %v50, %v49
  %v58 = vpack.c.b16 %v52, %v51
  %v59 = vpack.c.b16 %v54, %v53
  %v60 = vpack.c.b16 %v56, %v55
  %v65 = vunpack.c.l.b16 %v33
  %v66 = vunpack.c.l.b16 %v34
  %v67 = vunpack.c.l.b16 %v35
  %v68 = vunpack.c.l.b16 %v36
  %v69 = vpack.c.b16 %v66, %v65
  %v70 = vpack.c.b16 %v68, %v67
  %vm73 = vcmask 261120
  %v75 = vsel %vm73, %v57, 0
  %v78 = vsel %vm73, %v58, 0
  %v81 = vsel %vm73, %v59, 0
  %v84 = vsel %vm73, %v60, 0
  %86 = vmatpush.bf16.msra.mxu0 0
  %87 = vmatpush.bf16.msra.mxu0 0
  %88 = vmatpush.bf16.msra.mxu0 0
  %89 = vmatpush.bf16.msra.mxu0 0
  %90 = vmatpush.bf16.msra.mxu0 0
  %91 = vmatpush.bf16.msra.mxu0 0
  %92 = vmatpush.bf16.msra.mxu0 %v70
  %93 = vmatpush.bf16.msra.mxu0 %v69
  %94 = vmatmul.bf16.gmra.mxu0 %v75
  %v95 = vpop.f32.mrf.mxu0
  %v96 = vadd.f32 %v39, %v95
  %v97 = vpop.f32.mrf.mxu0
  %v98 = vadd.f32 %v39, %v97
  %99 = vmatmul.bf16.gmra.mxu0 %v78
  %v100 = vpop.f32.mrf.mxu0
  %v101 = vadd.f32 %v39, %v100
  %v102 = vpop.f32.mrf.mxu0
  %v103 = vadd.f32 %v39, %v102
  %104 = vmatmul.bf16.gmra.mxu0 %v81
  %v105 = vpop.f32.mrf.mxu0
  %v106 = vadd.f32 %v39, %v105
  %v107 = vpop.f32.mrf.mxu0
  %v108 = vadd.f32 %v39, %v107
  %109 = vmatmul.bf16.gmra.mxu0 %v84
  %v110 = vpop.f32.mrf.mxu0
  %v111 = vadd.f32 %v39, %v110
  %v112 = vpop.f32.mrf.mxu0
  %v113 = vadd.f32 %v39, %v112
  %114 = vdwg.mxu0
  %v115 = vpack.c.bf16 %v96, %v96
  %v116 = vpack.c.bf16 %v98, %v98
  %v117 = vpack.c.bf16 %v101, %v101
  %v118 = vpack.c.bf16 %v103, %v103
  %v119 = vpack.c.bf16 %v106, %v106
  %v120 = vpack.c.bf16 %v108, %v108
  %v121 = vpack.c.bf16 %v111, %v111
  %v122 = vpack.c.bf16 %v113, %v113
  %vm123 = vcmask 257024
  %124 = vst.msk [vmem:[%s3] sm:$0xf] %vm123, %v115
  %125 = vst.msk [vmem:[%s3 + $0x4] sm:$0xf] %vm123, %v116
  %126 = vst.msk [vmem:[%s3 + $0x8] sm:$0xf] %vm123, %v117
  %127 = vst.msk [vmem:[%s3 + $0xc] sm:$0xf] %vm123, %v118
  %128 = vst.msk [vmem:[%s3 + $0x10] sm:$0xf] %vm123, %v119
  %129 = vst.msk [vmem:[%s3 + $0x14] sm:$0xf] %vm123, %v120
  %130 = vst.msk [vmem:[%s3 + $0x18] sm:$0xf] %vm123, %v121
  %131 = vst.msk [vmem:[%s3 + $0x1c] sm:$0xf] %vm123, %v122
  %132 = vst.msk [vmem:[%s4] sm:$0xf] %vm123, %v25
  %133 = vst.msk [vmem:[%s4 + $0x4] sm:$0xf] %vm123, %v26
  %134 = vst.msk [vmem:[%s4 + $0x8] sm:$0xf] %vm123, %v27
  %135 = vst.msk [vmem:[%s4 + $0xc] sm:$0xf] %vm123, %v28
  %136 = vst.msk [vmem:[%s4 + $0x10] sm:$0xf] %vm123, %v29
  %137 = vst.msk [vmem:[%s4 + $0x14] sm:$0xf] %vm123, %v30
  %138 = vst.msk [vmem:[%s4 + $0x18] sm:$0xf] %vm123, %v31
  %139 = vst.msk [vmem:[%s4 + $0x1c] sm:$0xf] %vm123, %v32
  // Predicated region
  $region14: #{tpu_custom_call.1} parent=0 // pred_check
    _
  $region15: #{tpu_custom_call.1} parent=0 // pred_check_branch
    %141 = sbr.rel (0) target = $region17
  $region16: #{tpu_custom_call.1} parent=0 // pred_region
    _
  $region17: #{tpu_custom_call.1} parent=0 // pred_fallthru
    _
  // Predicated region
  $region18: #{tpu_custom_call.1} parent=0 // pred_check
    _
  $region19: #{tpu_custom_call.1} parent=0 // pred_check_branch
    %143 = sbr.rel (0) target = $region21
  $region20: #{tpu_custom_call.1} parent=0 // pred_region
    _
  $region21: #{tpu_custom_call.1} parent=0 // pred_fallthru
    _
  // Predicated region
  $region22: #{tpu_custom_call.1} parent=0 // pred_check
    _
  $region23: #{tpu_custom_call.1} parent=0 // pred_check_branch
    %145 = sbr.rel (0) target = $region25
  $region24: #{tpu_custom_call.1} parent=0 // pred_region
    _
  $region25: #{tpu_custom_call.1} parent=0 // pred_fallthru
    _
  // Predicated region
  $region26: #{tpu_custom_call.1} parent=0 // pred_check
    _
  $region27: #{tpu_custom_call.1} parent=0 // pred_check_branch
    %147 = sbr.rel (0) target = $region29
  $region28: #{tpu_custom_call.1} parent=0 // pred_region
    _
  $region29: #{tpu_custom_call.1} parent=0 // pred_fallthru
    _

</llo_original>
